<compile_context>
chip_gen: v7x
topology: tpu7x:2x2x1
jax: 0.10.0
libtpu: 0.0.40
codegen_flags: <defaults>
</compile_context>

<pallas_src>
import functools

import jax
import jax.numpy as jnp
from jax.experimental import pallas as pl
from jax.experimental.pallas import tpu as pltpu

LANE = 128  # TPU lane width; hidden/matmul feature dims are padded to it.


def _round_up(n, m):
    return ((n + m - 1) // m) * m


# --------------------------------------------------------------------------
# Fused kernel: feature layer + fused value/advantage heads + masked per-tile
# advantage partial sum.
#   x tile      : (tb, s_pad)
#   weight slab : (s_pad + 3*128, 128)   (VMEM-resident, constant index_map)
#   bias slab   : (8, 128)               (f32 always)
# Outputs:
#   va tile     : (tb, out_w)  lane 0 = value, lanes 1..n_actions = advantages
#   psum tile   : (1, 8, 128)  per-tile advantage sum (padded rows masked),
#                              broadcast across the block; wrapper reads [0,0].
# --------------------------------------------------------------------------
def _fused_forward_kernel(x_ref, w_ref, b_ref, va_ref, psum_ref, *,
                          s_pad, n_actions, out_w, batch, tb):
    cdt = w_ref.dtype  # matmul-input dtype (f32 or bf16); accumulation is f32

    x = x_ref[...]
    w1 = w_ref[0:s_pad, :]                             # (s_pad, 128)
    w2 = w_ref[s_pad:s_pad + LANE, :]                  # (128, 128)
    wh1 = w_ref[s_pad + LANE:s_pad + 2 * LANE, :]      # (128, 128)  [Wv1 | Wa1]
    wh2 = w_ref[s_pad + 2 * LANE:s_pad + 3 * LANE, :]  # (128, 128)  block-diag head

    # feature layer: Linear -> ReLU -> Linear -> ReLU  (f32 accumulation)
    h = jnp.dot(x, w1, preferred_element_type=jnp.float32) + b_ref[0:1, :]
    h = jnp.maximum(h, 0.0)
    h = jnp.dot(h.astype(cdt), w2, preferred_element_type=jnp.float32) + b_ref[1:2, :]
    h = jnp.maximum(h, 0.0)

    # fused value/advantage hidden layer: h @ [Wv1 | Wa1] -> [vh | ah]
    h = jnp.dot(h.astype(cdt), wh1, preferred_element_type=jnp.float32) + b_ref[2:3, :]
    h = jnp.maximum(h, 0.0)

    # fused heads: block-diagonal matmul -> [value | advantages | 0...]
    va = jnp.dot(h.astype(cdt), wh2, preferred_element_type=jnp.float32) + b_ref[3:4, :]

    # store only the lanes that carry data (value + advantages), not all 128
    va_ref[...] = va[:, :out_w]

    # masked per-tile advantage partial sum (padded rows >= batch excluded)
    row = pl.program_id(0) * tb + jax.lax.broadcasted_iota(jnp.int32, (tb, 1), 0)
    valid = (row < batch).astype(jnp.float32)                  # (tb, 1)
    adv_sum = jnp.sum(va[:, 1:1 + n_actions] * valid)          # scalar
    psum_ref[...] = jnp.full(psum_ref.shape, adv_sum, jnp.float32)


# --------------------------------------------------------------------------
# Offline parameter packing: 12 tensors -> 1 weight slab + 1 bias slab.
# Weights are stored already transposed ((in, out), so kernels do x @ W).
# --------------------------------------------------------------------------
def pack_params(p, n_states, n_hidden, n_actions, dtype=jnp.float32):
    H = n_hidden
    # TODO(synk): generalize to n_hidden > 64 / n_actions > 127 with K/N tiling.
    assert 2 * H <= LANE and (1 + n_actions) <= LANE

    s_pad = _round_up(n_states, 8)
    w_rows = s_pad + 3 * LANE

    w = jnp.zeros((w_rows, LANE), jnp.float32)
    # layer 1: (n_states, H)
    w = w.at[0:n_states, 0:H].set(p["w1"])
    r = s_pad
    # layer 2: (H, H)
    w = w.at[r:r + H, 0:H].set(p["w2"])
    r += LANE
    # fused head layer 1: [Wv1 | Wa1]  (H, 2H)
    w = w.at[r:r + H, 0:H].set(p["wv1"])
    w = w.at[r:r + H, H:2 * H].set(p["wa1"])
    r += LANE
    # fused head layer 2: block-diagonal (2H, 1 + n_actions)
    w = w.at[r:r + H, 0:1].set(p["wv2"])
    w = w.at[r + H:r + 2 * H, 1:1 + n_actions].set(p["wa2"])

    b = jnp.zeros((8, LANE), jnp.float32)   # biases stay f32 (no bf16 VALU on v5e)
    b = b.at[0, 0:H].set(p["b1"][0])
    b = b.at[1, 0:H].set(p["b2"][0])
    b = b.at[2, 0:H].set(p["bv1"][0])
    b = b.at[2, H:2 * H].set(p["ba1"][0])
    b = b.at[3, 0:1].set(p["bv2"][0])
    b = b.at[3, 1:1 + n_actions].set(p["ba2"][0])

    return dict(
        w_slab=w.astype(dtype),   # dtype=jnp.bfloat16 on v6e/v7x halves DMA bytes
        b_slab=b,
        s_pad=s_pad,
        n_states=n_states,
        n_hidden=H,
        n_actions=n_actions,
    )


# --------------------------------------------------------------------------
# Wrapper: single batch-tiled fused pass, combine done in plain JAX.
# --------------------------------------------------------------------------
def dueling_dqn_forward(x, packed, *, block_b=512):
    B, n_in = x.shape
    s_pad = packed["s_pad"]
    n_actions = packed["n_actions"]
    w_slab = packed["w_slab"]
    b_slab = packed["b_slab"]
    w_rows = w_slab.shape[0]
    cdt = w_slab.dtype

    out_w = _round_up(1 + n_actions, 8)    # value + advantages, sublane-friendly
    assert out_w <= LANE

    # Batch tile: big enough to amortize grid-step overhead, tiny vs VMEM.
    tb = min(block_b, _round_up(B, 8))
    # v7x megacore: prefer >= 2 tiles so ("parallel",) shards across both TCs.
    if _round_up(B, tb) // tb < 2 and tb > 8:
        tb = _round_up((tb + 1) // 2, 8)
    b_pad = _round_up(B, tb)
    n_tiles = b_pad // tb

    # Skip the pad/copy (an extra full HBM pass) when not needed.
    if n_in == s_pad and B == b_pad and x.dtype == cdt:
        x_p = x
    else:
        x_p = jnp.zeros((b_pad, s_pad), cdt).at[:B, :n_in].set(x.astype(cdt))

    itemsize = jnp.dtype(cdt).itemsize
    fwd_cost = pl.CostEstimate(
        flops=2 * b_pad * LANE * (s_pad + 3 * LANE),
        transcendentals=0,
        bytes_accessed=int(
            b_pad * s_pad * itemsize            # x
            + w_rows * LANE * itemsize          # weight slab
            + 8 * LANE * 4                      # bias slab
            + b_pad * out_w * 4                 # va output (lane-shrunk)
            + n_tiles * 8 * LANE * 4            # per-tile partial sums
        ),
    )

    va, psums = pl.pallas_call(
        functools.partial(
            _fused_forward_kernel,
            s_pad=s_pad, n_actions=n_actions, out_w=out_w, batch=B, tb=tb),
        out_shape=(
            jax.ShapeDtypeStruct((b_pad, out_w), jnp.float32),
            jax.ShapeDtypeStruct((n_tiles, 8, LANE), jnp.float32),
        ),
        grid=(n_tiles,),
        in_specs=[
            pl.BlockSpec((tb, s_pad), lambda i: (i, 0)),       # x: per-tile
            pl.BlockSpec((w_rows, LANE), lambda i: (0, 0)),    # weights: resident
            pl.BlockSpec((8, LANE), lambda i: (0, 0)),         # biases: resident
        ],
        out_specs=(
            pl.BlockSpec((tb, out_w), lambda i: (i, 0)),       # va: per-tile
            pl.BlockSpec((1, 8, LANE), lambda i: (i, 0, 0)),   # partial sums
        ),
        compiler_params=pltpu.CompilerParams(
            dimension_semantics=("parallel",),                 # v7x megacore
            vmem_limit_bytes=32 * 1024 * 1024,
        ),
        cost_estimate=fwd_cost,
    )(x_p, w_slab, b_slab)

    # Global advantage mean (PyTorch `.mean()` with no dim: over B * n_actions),
    # assembled from the per-tile masked partial sums (no re-scan of va).
    adv_mean = jnp.sum(psums[:, 0, 0]) / jnp.float32(B * n_actions)

    # Dueling combine in plain JAX: trivial elementwise work, XLA fuses it.
    v = va[:B, 0:1]
    a = va[:B, 1:1 + n_actions]
    return (v + a) - adv_mean


# --------------------------------------------------------------------------
# Parameter init mimicking torch.nn.Linear default (U[-1/sqrt(fan_in), +]).
# Weights stored transposed: (fan_in, fan_out).
# --------------------------------------------------------------------------
def init_params(key, n_states, n_actions, n_hidden):
    def linear(key, fan_in, fan_out):
        kw, kb = jax.random.split(key)
        bound = 1.0 / jnp.sqrt(jnp.float32(fan_in))
        w = jax.random.uniform(kw, (fan_in, fan_out), jnp.float32, -bound, bound)
        b = jax.random.uniform(kb, (1, fan_out), jnp.float32, -bound, bound)
        return w, b

    keys = jax.random.split(key, 6)
    w1, b1 = linear(keys[0], n_states, n_hidden)
    w2, b2 = linear(keys[1], n_hidden, n_hidden)
    wv1, bv1 = linear(keys[2], n_hidden, n_hidden)
    wv2, bv2 = linear(keys[3], n_hidden, 1)
    wa1, ba1 = linear(keys[4], n_hidden, n_hidden)
    wa2, ba2 = linear(keys[5], n_hidden, n_actions)
    return dict(
        w1=w1, b1=b1, w2=w2, b2=b2,
        wv1=wv1, bv1=bv1, wv2=wv2, bv2=bv2,
        wa1=wa1, ba1=ba1, wa2=wa2, ba2=ba2,
    )


def reference_forward(x, p):
    """Pure-JAX reference with identical semantics (sanity check)."""
    h = jnp.maximum(x @ p["w1"] + p["b1"], 0.0)
    h = jnp.maximum(h @ p["w2"] + p["b2"], 0.0)
    v = jnp.maximum(h @ p["wv1"] + p["bv1"], 0.0) @ p["wv2"] + p["bv2"]
    a = jnp.maximum(h @ p["wa1"] + p["ba1"], 0.0) @ p["wa2"] + p["ba2"]
    return v + (a - jnp.mean(a))


if __name__ == "__main__":
    n_states, n_actions, n_hidden = 8, 4, 32
    batch = 2

    key = jax.random.PRNGKey(0)
    kx, kp = jax.random.split(key)
    x = jax.random.normal(kx, (batch, n_states), jnp.float32)
    params = init_params(kp, n_states, n_actions, n_hidden)
    packed = pack_params(params, n_states, n_hidden, n_actions)  # f32 demo

    q = dueling_dqn_forward(x, packed)
    q = jax.block_until_ready(q)

    q_ref = reference_forward(x, params)
    assert q.shape == (batch, n_actions)
    assert jnp.allclose(q, q_ref, atol=1e-4, rtol=1e-4), (q, q_ref)

    print("KERNEL_OK")
</pallas_src>

<mosaic_0001>
module attributes {stable_mosaic.version = 11 : i64} {
  func.func @_fused_forward_kernel(%arg0: i32, %arg1: memref<8x8xf32, #tpu.memory_space<vmem>>, %arg2: memref<392x128xf32, #tpu.memory_space<vmem>>, %arg3: memref<8x128xf32, #tpu.memory_space<vmem>>, %arg4: memref<8x8xf32, #tpu.memory_space<vmem>>, %arg5: memref<1x8x128xf32, #tpu.memory_space<vmem>>) attributes {dimension_semantics = [#tpu.dimension_semantics<parallel>], iteration_bounds = array<i64: 1>, scalar_prefetch = 0 : i64, scratch_operands = 0 : i64, tpu.core_type = #tpu.core_type<tc>, window_params = [{transform_indices = @transform_0, window_bounds = array<i64: 8, 8>}, {pipeline_mode = #tpu.pipeline_mode<synchronous>, transform_indices = @transform_1, window_bounds = array<i64: 392, 128>}, {pipeline_mode = #tpu.pipeline_mode<synchronous>, transform_indices = @transform_2, window_bounds = array<i64: 8, 128>}, {transform_indices = @transform_3, window_bounds = array<i64: 8, 8>}, {transform_indices = @transform_4, window_bounds = array<i64: 1, 8, 128>}]} {
    %c0 = arith.constant 0 : index
    %c0_0 = arith.constant 0 : index
    %0 = vector.load %arg1[%c0, %c0_0] : memref<8x8xf32, #tpu.memory_space<vmem>>, vector<8x8xf32>
    %c0_1 = arith.constant 0 : index
    %c0_2 = arith.constant 0 : index
    %1 = vector.load %arg2[%c0_1, %c0_2] : memref<392x128xf32, #tpu.memory_space<vmem>>, vector<8x128xf32>
    %c8 = arith.constant 8 : index
    %c0_3 = arith.constant 0 : index
    %2 = vector.load %arg2[%c8, %c0_3] : memref<392x128xf32, #tpu.memory_space<vmem>>, vector<128x128xf32>
    %c136 = arith.constant 136 : index
    %c0_4 = arith.constant 0 : index
    %3 = vector.load %arg2[%c136, %c0_4] : memref<392x128xf32, #tpu.memory_space<vmem>>, vector<128x128xf32>
    %c264 = arith.constant 264 : index
    %c0_5 = arith.constant 0 : index
    %4 = vector.load %arg2[%c264, %c0_5] : memref<392x128xf32, #tpu.memory_space<vmem>>, vector<128x128xf32>
    %cst = arith.constant dense<0.000000e+00> : vector<8x128xf32>
    %5 = tpu.matmul %0, %1, %cst {dimension_numbers = #tpu.dot_dimension_numbers<[1], [0], [0], [1], [0, 0, 1, 1], [], []>} : vector<8x8xf32>, vector<8x128xf32>, vector<8x128xf32> -> vector<8x128xf32>
    %c0_6 = arith.constant 0 : index
    %c0_7 = arith.constant 0 : index
    %6 = vector.load %arg3[%c0_6, %c0_7] : memref<8x128xf32, #tpu.memory_space<vmem>>, vector<1x128xf32>
    %7 = vector.broadcast %6 : vector<1x128xf32> to vector<8x128xf32>
    %8 = arith.addf %5, %7 : vector<8x128xf32>
    %cst_8 = arith.constant 0.000000e+00 : f32
    %9 = vector.broadcast %cst_8 : f32 to vector<8x128xf32>
    %10 = arith.maximumf %8, %9 : vector<8x128xf32>
    %cst_9 = arith.constant dense<0.000000e+00> : vector<8x128xf32>
    %11 = tpu.matmul %10, %2, %cst_9 {dimension_numbers = #tpu.dot_dimension_numbers<[1], [0], [0], [1], [0, 0, 1, 1], [], []>} : vector<8x128xf32>, vector<128x128xf32>, vector<8x128xf32> -> vector<8x128xf32>
    %c1 = arith.constant 1 : index
    %c0_10 = arith.constant 0 : index
    %12 = vector.load %arg3[%c1, %c0_10] : memref<8x128xf32, #tpu.memory_space<vmem>>, vector<1x128xf32>
    %13 = vector.broadcast %12 : vector<1x128xf32> to vector<8x128xf32>
    %14 = arith.addf %11, %13 : vector<8x128xf32>
    %cst_11 = arith.constant 0.000000e+00 : f32
    %15 = vector.broadcast %cst_11 : f32 to vector<8x128xf32>
    %16 = arith.maximumf %14, %15 : vector<8x128xf32>
    %cst_12 = arith.constant dense<0.000000e+00> : vector<8x128xf32>
    %17 = tpu.matmul %16, %3, %cst_12 {dimension_numbers = #tpu.dot_dimension_numbers<[1], [0], [0], [1], [0, 0, 1, 1], [], []>} : vector<8x128xf32>, vector<128x128xf32>, vector<8x128xf32> -> vector<8x128xf32>
    %c2 = arith.constant 2 : index
    %c0_13 = arith.constant 0 : index
    %18 = vector.load %arg3[%c2, %c0_13] : memref<8x128xf32, #tpu.memory_space<vmem>>, vector<1x128xf32>
    %19 = vector.broadcast %18 : vector<1x128xf32> to vector<8x128xf32>
    %20 = arith.addf %17, %19 : vector<8x128xf32>
    %cst_14 = arith.constant 0.000000e+00 : f32
    %21 = vector.broadcast %cst_14 : f32 to vector<8x128xf32>
    %22 = arith.maximumf %20, %21 : vector<8x128xf32>
    %cst_15 = arith.constant dense<0.000000e+00> : vector<8x128xf32>
    %23 = tpu.matmul %22, %4, %cst_15 {dimension_numbers = #tpu.dot_dimension_numbers<[1], [0], [0], [1], [0, 0, 1, 1], [], []>} : vector<8x128xf32>, vector<128x128xf32>, vector<8x128xf32> -> vector<8x128xf32>
    %c3 = arith.constant 3 : index
    %c0_16 = arith.constant 0 : index
    %24 = vector.load %arg3[%c3, %c0_16] : memref<8x128xf32, #tpu.memory_space<vmem>>, vector<1x128xf32>
    %25 = vector.broadcast %24 : vector<1x128xf32> to vector<8x128xf32>
    %26 = arith.addf %23, %25 : vector<8x128xf32>
    %27 = vector.extract_strided_slice %26 {offsets = [0, 0], sizes = [8, 8], strides = [1, 1]} : vector<8x128xf32> to vector<8x8xf32>
    %c0_17 = arith.constant 0 : index
    %c0_18 = arith.constant 0 : index
    %28 = vector.load %arg4[%c0_17, %c0_18] : memref<8x8xf32, #tpu.memory_space<vmem>>, vector<8x8xf32>
    tpu.vector_store %arg4[%c0_17, %c0_18], %27 {strides = array<i32>} : memref<8x8xf32, #tpu.memory_space<vmem>>, vector<8x8xf32>,
    %c8_i32 = arith.constant 8 : i32
    %29 = arith.muli %arg0, %c8_i32 : i32
    %30 = tpu.iota {dimensions = array<i32: 0>} : vector<8x1xi32>
    %31 = vector.broadcast %29 : i32 to vector<8x1xi32>
    %32 = arith.addi %31, %30 : vector<8x1xi32>
    %c2_i32 = arith.constant 2 : i32
    %33 = vector.broadcast %c2_i32 : i32 to vector<8x1xi32>
    %34 = arith.cmpi slt, %32, %33 : vector<8x1xi32>
    %35 = arith.extui %34 : vector<8x1xi1> to vector<8x1xi32>
    %36 = arith.sitofp %35 : vector<8x1xi32> to vector<8x1xf32>
    %37 = vector.extract_strided_slice %26 {offsets = [0, 1], sizes = [8, 4], strides = [1, 1]} : vector<8x128xf32> to vector<8x4xf32>
    %38 = vector.broadcast %36 : vector<8x1xf32> to vector<8x4xf32>
    %39 = arith.mulf %37, %38 : vector<8x4xf32>
    %40 = vector.shape_cast %39 : vector<8x4xf32> to vector<1x8x4xf32>
    %cst_19 = arith.constant dense<0.000000e+00> : vector<1xf32>
    %41 = vector.multi_reduction <add>, %40, %cst_19 [1, 2] : vector<1x8x4xf32> to vector<1xf32>
    %42 = vector.shape_cast %41 : vector<1xf32> to vector<1x1x1xf32>
    %43 = vector.extract %42[0, 0, 0] : f32 from vector<1x1x1xf32>
    %44 = vector.broadcast %43 : f32 to vector<1x8x128xf32>
    %c0_20 = arith.constant 0 : index
    %c0_21 = arith.constant 0 : index
    %c0_22 = arith.constant 0 : index
    %45 = vector.load %arg5[%c0_20, %c0_21, %c0_22] : memref<1x8x128xf32, #tpu.memory_space<vmem>>, vector<1x8x128xf32>
    tpu.vector_store %arg5[%c0_20, %c0_21, %c0_22], %44 {strides = array<i32>} : memref<1x8x128xf32, #tpu.memory_space<vmem>>, vector<1x8x128xf32>,
    return
  }
  func.func @transform_0(%arg0: i32) -> (i32, i32) {
    %c0_i32 = arith.constant 0 : i32
    %c0_i32_0 = arith.constant 0 : i32
    return %arg0, %c0_i32 : i32, i32
  }
  func.func @transform_1(%arg0: i32) -> (i32, i32) {
    %c0_i32 = arith.constant 0 : i32
    %c0_i32_0 = arith.constant 0 : i32
    %c0_i32_1 = arith.constant 0 : i32
    return %c0_i32, %c0_i32_0 : i32, i32
  }
  func.func @transform_2(%arg0: i32) -> (i32, i32) {
    %c0_i32 = arith.constant 0 : i32
    %c0_i32_0 = arith.constant 0 : i32
    %c0_i32_1 = arith.constant 0 : i32
    return %c0_i32, %c0_i32_0 : i32, i32
  }
  func.func @transform_3(%arg0: i32) -> (i32, i32) {
    %c0_i32 = arith.constant 0 : i32
    %c0_i32_0 = arith.constant 0 : i32
    return %arg0, %c0_i32 : i32, i32
  }
  func.func @transform_4(%arg0: i32) -> (i32, i32, i32) {
    %c0_i32 = arith.constant 0 : i32
    %c0_i32_0 = arith.constant 0 : i32
    %c0_i32_1 = arith.constant 0 : i32
    return %arg0, %c0_i32, %c0_i32_0 : i32, i32, i32
  }
}

</mosaic_0001>

<llo_original>
// kernel: tpu_custom_call.1
$region0: #{tpu_custom_call.1}
  #allocation0 [shape = 'u32[]', space=smem, size = 0x4, offset = 0x4, fixed_abs, tag = 'smem constant byte address 0x4 - core index']
  #allocation1 [shape = 'u32[144,128]{1,0:T(1,128)}', space=vmem, size = 0x12000, scoped, tag = 'internal scratch']
  %s0 = inlined_call_operand.hbm [shape: f32[8,8], index: 0, kind: input, shape index: {}]
  %s1 = inlined_call_operand.hbm [shape: f32[392,128], index: 1, kind: input, shape index: {}]
  %s2 = inlined_call_operand.hbm [shape: f32[8,128], index: 2, kind: input, shape index: {}]
  %s3 = inlined_call_operand.hbm [shape: f32[8,8], index: 3, kind: output, shape index: {0}]
  %s4 = inlined_call_operand.hbm [shape: f32[1,8,128], index: 4, kind: output, shape index: {1}]
  %5 = xla_tuple %s3, %s4
  %s6 = sld [smem:[#allocation0]]
  $region42: #{tpu_custom_call.1} parent=0
    _
  %s8 = ssub.s32 1, %s6
  %s9 = scalar_select 0, %s8, %s6
  $region1: #{tpu_custom_call.1} parent=0
    #allocation2 [shape = 'u8[4096]{0}', space=vmem, size = 0x1000, scoped, tag = 'input window, operand 0, single buffered']
    #allocation3 [shape = 's32[1]{0}', space=sflag, size = 0x4, scoped, tag = 'scoped memory for tpu_custom_call.1']
    #allocation4 [shape = 's32[1]{0}', space=sflag, size = 0x4, scoped, tag = 'scoped memory for tpu_custom_call.1']
    #allocation5 [shape = 'u8[200704]{0}', space=vmem, size = 0x31000, scoped, tag = 'input window, operand 1, single buffered']
    #allocation6 [shape = 's32[1]{0}', space=sflag, size = 0x4, scoped, tag = 'scoped memory for tpu_custom_call.1']
    #allocation7 [shape = 'u8[4096]{0}', space=vmem, size = 0x1000, scoped, tag = 'input window, operand 2, single buffered']
    #allocation8 [shape = 'u8[4096]{0}', space=vmem, size = 0x1000, scoped, tag = 'output window, operand 0, single buffered']
    #allocation9 [shape = 'u8[4096]{0}', space=vmem, size = 0x1000, scoped, tag = 'output window, operand 1, single buffered']
    #allocation10 [shape = 's32[1]{0}', space=sflag, size = 0x4, scoped, tag = 'scoped memory for tpu_custom_call.1']
    %10 = vsyncpa [#allocation3], 0
    %11 = vsyncpa [#allocation6], 0
    %12 = vsyncpa [#allocation4], 0
    %13 = vsyncpa [#allocation10], 0
    // Predicated region
    $region2: #{tpu_custom_call.1} parent=1 // pred_check
      _
    $region3: #{tpu_custom_call.1} parent=1 // pred_check_branch
      %15 = sbr.rel (0) target = $region5
    $region4: #{tpu_custom_call.1} parent=1 // pred_region
      %s17 = ssub.s32 128, 128
      %18 = vsyncadd [#allocation3], %s17
      %s20 = sshll.u32 [#allocation2], 4
      %s21 = int_to_ptr.vmem [resolvable:$true] %s20
      %23 = dma.hbm_to_vmem [thread:$0]  %s0, 128, %s21, [#allocation3]
    $region5: #{tpu_custom_call.1} parent=1 // pred_fallthru
      _
    // Predicated region
    $region6: #{tpu_custom_call.1} parent=1 // pred_check
      _
    $region7: #{tpu_custom_call.1} parent=1 // pred_check_branch
      %25 = sbr.rel (0) target = $region9
    $region8: #{tpu_custom_call.1} parent=1 // pred_region
      %s27 = ssub.s32 6272, 6272
      %28 = vsyncadd [#allocation6], %s27
      %s29 = sshll.u32 [#allocation5], 4
      %s30 = int_to_ptr.vmem [resolvable:$true] %s29
      %35 = dma.hbm_to_vmem [thread:$0]  %s1, 6272, %s30, [#allocation6], 128, 128, 8
    $region9: #{tpu_custom_call.1} parent=1 // pred_fallthru
      _
    // Predicated region
    $region10: #{tpu_custom_call.1} parent=1 // pred_check
      _
    $region11: #{tpu_custom_call.1} parent=1 // pred_check_branch
      %37 = sbr.rel (0) target = $region13
    $region12: #{tpu_custom_call.1} parent=1 // pred_region
      %s39 = ssub.s32 128, 128
      %40 = vsyncadd [#allocation6], %s39
      %s42 = sshll.u32 [#allocation7], 4
      %s43 = int_to_ptr.vmem [resolvable:$true] %s42
      %45 = dma.hbm_to_vmem [thread:$0]  %s2, 128, %s43, [#allocation6]
    $region13: #{tpu_custom_call.1} parent=1 // pred_fallthru
      _
    // Predicated region
    $region14: #{tpu_custom_call.1} parent=1 // pred_check
      _
    $region15: #{tpu_custom_call.1} parent=1 // pred_check_branch
      %47 = sbr.rel (0) target = $region17
    $region16: #{tpu_custom_call.1} parent=1 // pred_region
      %48 = dma.done [#allocation3], 128
    $region17: #{tpu_custom_call.1} parent=1 // pred_fallthru
      _
    // Predicated region
    $region18: #{tpu_custom_call.1} parent=1 // pred_check
      _
    $region19: #{tpu_custom_call.1} parent=1 // pred_check_branch
      %50 = sbr.rel (0) target = $region21
    $region20: #{tpu_custom_call.1} parent=1 // pred_region
      %51 = dma.done [#allocation6], 6272
    $region21: #{tpu_custom_call.1} parent=1 // pred_fallthru
      _
    // Predicated region
    $region22: #{tpu_custom_call.1} parent=1 // pred_check
      _
    $region23: #{tpu_custom_call.1} parent=1 // pred_check_branch
      %53 = sbr.rel (0) target = $region25
    $region24: #{tpu_custom_call.1} parent=1 // pred_region
      %54 = dma.done [#allocation6], 128
    $region25: #{tpu_custom_call.1} parent=1 // pred_fallthru
      _
    %v55 = vld [vmem:[#allocation2] sm:$0xff]
    %v56 = vld [vmem:[#allocation5] sm:$0xff]
    %v57 = vld [vmem:[#allocation5 + $0x8] sm:$0xff]
    %v58 = vld [vmem:[#allocation5 + $0x10] sm:$0xff]
    %v59 = vld [vmem:[#allocation5 + $0x18] sm:$0xff]
    %v60 = vld [vmem:[#allocation5 + $0x20] sm:$0xff]
    %v61 = vld [vmem:[#allocation5 + $0x28] sm:$0xff]
    %v62 = vld [vmem:[#allocation5 + $0x30] sm:$0xff]
    %v63 = vld [vmem:[#allocation5 + $0x38] sm:$0xff]
    %v64 = vld [vmem:[#allocation5 + $0x40] sm:$0xff]
    %v65 = vld [vmem:[#allocation5 + $0x48] sm:$0xff]
    %v66 = vld [vmem:[#allocation5 + $0x50] sm:$0xff]
    %v67 = vld [vmem:[#allocation5 + $0x58] sm:$0xff]
    %v68 = vld [vmem:[#allocation5 + $0x60] sm:$0xff]
    %v69 = vld [vmem:[#allocation5 + $0x68] sm:$0xff]
    %v70 = vld [vmem:[#allocation5 + $0x70] sm:$0xff]
    %v71 = vld [vmem:[#allocation5 + $0x78] sm:$0xff]
    %v72 = vld [vmem:[#allocation5 + $0x80] sm:$0xff]
    %v73 = vld [vmem:[#allocation5 + $0x88] sm:$0xff]
    %v74 = vld [vmem:[#allocation5 + $0x90] sm:$0xff]
    %v75 = vld [vmem:[#allocation5 + $0x98] sm:$0xff]
    %v76 = vld [vmem:[#allocation5 + $0xa0] sm:$0xff]
    %v77 = vld [vmem:[#allocation5 + $0xa8] sm:$0xff]
    %v78 = vld [vmem:[#allocation5 + $0xb0] sm:$0xff]
    %v79 = vld [vmem:[#allocation5 + $0xb8] sm:$0xff]
    %v80 = vld [vmem:[#allocation5 + $0xc0] sm:$0xff]
    %v81 = vld [vmem:[#allocation5 + $0xc8] sm:$0xff]
    %v82 = vld [vmem:[#allocation5 + $0xd0] sm:$0xff]
    %v83 = vld [vmem:[#allocation5 + $0xd8] sm:$0xff]
    %v84 = vld [vmem:[#allocation5 + $0xe0] sm:$0xff]
    %v85 = vld [vmem:[#allocation5 + $0xe8] sm:$0xff]
    %v86 = vld [vmem:[#allocation5 + $0xf0] sm:$0xff]
    %v87 = vld [vmem:[#allocation5 + $0xf8] sm:$0xff]
    %v88 = vld [vmem:[#allocation5 + $0x100] sm:$0xff]
    %v89 = vld [vmem:[#allocation5 + $0x108] sm:$0xff]
    %v90 = vld [vmem:[#allocation5 + $0x110] sm:$0xff]
    %v91 = vld [vmem:[#allocation5 + $0x118] sm:$0xff]
    %v92 = vld [vmem:[#allocation5 + $0x120] sm:$0xff]
    %v93 = vld [vmem:[#allocation5 + $0x128] sm:$0xff]
    %v94 = vld [vmem:[#allocation5 + $0x130] sm:$0xff]
    %v95 = vld [vmem:[#allocation5 + $0x138] sm:$0xff]
    %v96 = vld [vmem:[#allocation5 + $0x140] sm:$0xff]
    %v97 = vld [vmem:[#allocation5 + $0x148] sm:$0xff]
    %v98 = vld [vmem:[#allocation5 + $0x150] sm:$0xff]
    %v99 = vld [vmem:[#allocation5 + $0x158] sm:$0xff]
    %v100 = vld [vmem:[#allocation5 + $0x160] sm:$0xff]
    %v101 = vld [vmem:[#allocation5 + $0x168] sm:$0xff]
    %v102 = vld [vmem:[#allocation5 + $0x170] sm:$0xff]
    %v103 = vld [vmem:[#allocation5 + $0x178] sm:$0xff]
    %v104 = vld [vmem:[#allocation5 + $0x180] sm:$0xff]
    %v105 = vld [vmem:[#allocation7] sm:$0x1]
    %v106 = vlaneseq
    %v107 = vshrl.u32 %v106, 7
    %v108 = vsub.s32 0, %v107
    %v109 = vrot.slane %v105, %v108
    %vm110 = vcmask 64512
    %v112 = vsel %vm110, %v55, 0
    %114 = vmatprep.subr.mxu0 0.0
    %115 = vmatpush1.msra.mxu0 %v56
    %116 = vmatprep.subr.mxu0 0.0
    %117 = vmatpush1.msra.mxu0 0.0
    %118 = vmatprep.subr.mxu0 0.0
    %119 = vmatpush1.msra.mxu0 0.0
    %120 = vmatprep.subr.mxu0 0.0
    %121 = vmatpush1.msra.mxu0 0.0
    %122 = vmatprep.subr.mxu0 0.0
    %123 = vmatpush1.msra.mxu0 0.0
    %124 = vmatprep.subr.mxu0 0.0
    %125 = vmatpush1.msra.mxu0 0.0
    %126 = vmatprep.subr.mxu0 0.0
    %127 = vmatpush1.msra.mxu0 0.0
    %128 = vmatprep.subr.mxu0 0.0
    %129 = vmatpush1.msra.mxu0 0.0
    %130 = vmatprep.subr.mxu0 0.0
    %131 = vmatpush1.msra.mxu0 0.0
    %132 = vmatprep.subr.mxu0 0.0
    %133 = vmatpush1.msra.mxu0 0.0
    %134 = vmatprep.subr.mxu0 0.0
    %135 = vmatpush1.msra.mxu0 0.0
    %136 = vmatprep.subr.mxu0 0.0
    %137 = vmatpush1.msra.mxu0 0.0
    %138 = vmatprep.subr.mxu0 0.0
    %139 = vmatpush1.msra.mxu0 0.0
    %140 = vmatprep.subr.mxu0 0.0
    %141 = vmatpush1.msra.mxu0 0.0
    %142 = vmatprep.subr.mxu0 0.0
    %143 = vmatpush1.msra.mxu0 0.0
    %144 = vmatprep.subr.mxu0 0.0
    %145 = vmatpush1.msra.mxu0 0.0
    %146 = vmatprep.subr.mxu0 0.0
    %147 = vmatpush1.msra.mxu0 0.0
    %148 = vmatprep.subr.mxu0 0.0
    %149 = vmatpush1.msra.mxu0 0.0
    %150 = vmatprep.subr.mxu0 0.0
    %151 = vmatpush1.msra.mxu0 0.0
    %152 = vmatprep.subr.mxu0 0.0
    %153 = vmatpush1.msra.mxu0 0.0
    %154 = vmatprep.subr.mxu0 0.0
    %155 = vmatpush1.msra.mxu0 0.0
    %156 = vmatprep.subr.mxu0 0.0
    %157 = vmatpush1.msra.mxu0 0.0
    %158 = vmatprep.subr.mxu0 0.0
    %159 = vmatpush1.msra.mxu0 0.0
    %160 = vmatprep.subr.mxu0 0.0
    %161 = vmatpush1.msra.mxu0 0.0
    %162 = vmatprep.subr.mxu0 0.0
    %163 = vmatpush1.msra.mxu0 0.0
    %164 = vmatprep.subr.mxu0 0.0
    %165 = vmatpush1.msra.mxu0 0.0
    %166 = vmatprep.subr.mxu0 0.0
    %167 = vmatpush1.msra.mxu0 0.0
    %168 = vmatprep.subr.mxu0 0.0
    %169 = vmatpush1.msra.mxu0 0.0
    %170 = vmatprep.subr.mxu0 0.0
    %171 = vmatpush1.msra.mxu0 0.0
    %172 = vmatprep.subr.mxu0 0.0
    %173 = vmatpush1.msra.mxu0 0.0
    %174 = vmatprep.subr.mxu0 0.0
    %175 = vmatpush1.msra.mxu0 0.0
    %176 = vmatprep.subr.mxu0 0.0
    %177 = vmatpush1.msra.mxu0 0.0
    %178 = vmatprep.mubr.f32.mxu0 0.0
    %179 = vmatmul.mubr.f32.gmra.mrb[0].mxu0 %v112
    %v180 = vpop.f32.mrb[0].mxu0
    %v181 = vadd.f32 %v109, %v180
    %v182 = vpop.f32.mrb[0].mxu0
    %183 = vdwg.mxu0
    %v184 = vmax.f32 %v181, 0.0
    %v185 = vld [vmem:[#allocation7 + $0x1] sm:$0x1]
    %v186 = vlaneseq
    %v187 = vshrl.u32 %v186, 7
    %v188 = vsub.s32 0, %v187
    %v189 = vrot.slane %v185, %v188
    %190 = vmatprep.subr.mxu0 0.0
    %191 = vmatpush1.msra.mxu0 %v57
    %192 = vmatprep.subr.mxu0 0.0
    %193 = vmatpush1.msra.mxu0 %v58
    %194 = vmatprep.subr.mxu0 0.0
    %195 = vmatpush1.msra.mxu0 %v59
    %196 = vmatprep.subr.mxu0 0.0
    %197 = vmatpush1.msra.mxu0 %v60
    %198 = vmatprep.subr.mxu0 0.0
    %199 = vmatpush1.msra.mxu0 %v61
    %200 = vmatprep.subr.mxu0 0.0
    %201 = vmatpush1.msra.mxu0 %v62
    %202 = vmatprep.subr.mxu0 0.0
    %203 = vmatpush1.msra.mxu0 %v63
    %204 = vmatprep.subr.mxu0 0.0
    %205 = vmatpush1.msra.mxu0 %v64
    %206 = vmatprep.subr.mxu0 0.0
    %207 = vmatpush1.msra.mxu0 %v65
    %208 = vmatprep.subr.mxu0 0.0
    %209 = vmatpush1.msra.mxu0 %v66
    %210 = vmatprep.subr.mxu0 0.0
    %211 = vmatpush1.msra.mxu0 %v67
    %212 = vmatprep.subr.mxu0 0.0
    %213 = vmatpush1.msra.mxu0 %v68
    %214 = vmatprep.subr.mxu0 0.0
    %215 = vmatpush1.msra.mxu0 %v69
    %216 = vmatprep.subr.mxu0 0.0
    %217 = vmatpush1.msra.mxu0 %v70
    %218 = vmatprep.subr.mxu0 0.0
    %219 = vmatpush1.msra.mxu0 %v71
    %220 = vmatprep.subr.mxu0 0.0
    %221 = vmatpush1.msra.mxu0 %v72
    %222 = vmatprep.subr.mxu0 0.0
    %223 = vmatpush1.msra.mxu0 0.0
    %224 = vmatprep.subr.mxu0 0.0
    %225 = vmatpush1.msra.mxu0 0.0
    %226 = vmatprep.subr.mxu0 0.0
    %227 = vmatpush1.msra.mxu0 0.0
    %228 = vmatprep.subr.mxu0 0.0
    %229 = vmatpush1.msra.mxu0 0.0
    %230 = vmatprep.subr.mxu0 0.0
    %231 = vmatpush1.msra.mxu0 0.0
    %232 = vmatprep.subr.mxu0 0.0
    %233 = vmatpush1.msra.mxu0 0.0
    %234 = vmatprep.subr.mxu0 0.0
    %235 = vmatpush1.msra.mxu0 0.0
    %236 = vmatprep.subr.mxu0 0.0
    %237 = vmatpush1.msra.mxu0 0.0
    %238 = vmatprep.subr.mxu0 0.0
    %239 = vmatpush1.msra.mxu0 0.0
    %240 = vmatprep.subr.mxu0 0.0
    %241 = vmatpush1.msra.mxu0 0.0
    %242 = vmatprep.subr.mxu0 0.0
    %243 = vmatpush1.msra.mxu0 0.0
    %244 = vmatprep.subr.mxu0 0.0
    %245 = vmatpush1.msra.mxu0 0.0
    %246 = vmatprep.subr.mxu0 0.0
    %247 = vmatpush1.msra.mxu0 0.0
    %248 = vmatprep.subr.mxu0 0.0
    %249 = vmatpush1.msra.mxu0 0.0
    %250 = vmatprep.subr.mxu0 0.0
    %251 = vmatpush1.msra.mxu0 0.0
    %252 = vmatprep.subr.mxu0 0.0
    %253 = vmatpush1.msra.mxu0 0.0
    %254 = vmatprep.mubr.f32.mxu0 0.0
    %255 = vmatmul.mubr.f32.gmra.mrb[0].mxu0 %v184
    %v256 = vpop.f32.mrb[0].mxu0
    %v257 = vadd.f32 %v189, %v256
    %v258 = vpop.f32.mrb[0].mxu0
    %259 = vdwg.mxu0
    %v260 = vmax.f32 %v257, 0.0
    %v261 = vld [vmem:[#allocation7 + $0x2] sm:$0x1]
    %v262 = vlaneseq
    %v263 = vshrl.u32 %v262, 7
    %v264 = vsub.s32 0, %v263
    %v265 = vrot.slane %v261, %v264
    %266 = vmatprep.subr.mxu0 0.0
    %267 = vmatpush1.msra.mxu0 %v73
    %268 = vmatprep.subr.mxu0 0.0
    %269 = vmatpush1.msra.mxu0 %v74
    %270 = vmatprep.subr.mxu0 0.0
    %271 = vmatpush1.msra.mxu0 %v75
    %272 = vmatprep.subr.mxu0 0.0
    %273 = vmatpush1.msra.mxu0 %v76
    %274 = vmatprep.subr.mxu0 0.0
    %275 = vmatpush1.msra.mxu0 %v77
    %276 = vmatprep.subr.mxu0 0.0
    %277 = vmatpush1.msra.mxu0 %v78
    %278 = vmatprep.subr.mxu0 0.0
    %279 = vmatpush1.msra.mxu0 %v79
    %280 = vmatprep.subr.mxu0 0.0
    %281 = vmatpush1.msra.mxu0 %v80
    %282 = vmatprep.subr.mxu0 0.0
    %283 = vmatpush1.msra.mxu0 %v81
    %284 = vmatprep.subr.mxu0 0.0
    %285 = vmatpush1.msra.mxu0 %v82
    %286 = vmatprep.subr.mxu0 0.0
    %287 = vmatpush1.msra.mxu0 %v83
    %288 = vmatprep.subr.mxu0 0.0
    %289 = vmatpush1.msra.mxu0 %v84
    %290 = vmatprep.subr.mxu0 0.0
    %291 = vmatpush1.msra.mxu0 %v85
    %292 = vmatprep.subr.mxu0 0.0
    %293 = vmatpush1.msra.mxu0 %v86
    %294 = vmatprep.subr.mxu0 0.0
    %295 = vmatpush1.msra.mxu0 %v87
    %296 = vmatprep.subr.mxu0 0.0
    %297 = vmatpush1.msra.mxu0 %v88
    %298 = vmatprep.subr.mxu0 0.0
    %299 = vmatpush1.msra.mxu0 0.0
    %300 = vmatprep.subr.mxu0 0.0
    %301 = vmatpush1.msra.mxu0 0.0
    %302 = vmatprep.subr.mxu0 0.0
    %303 = vmatpush1.msra.mxu0 0.0
    %304 = vmatprep.subr.mxu0 0.0
    %305 = vmatpush1.msra.mxu0 0.0
    %306 = vmatprep.subr.mxu0 0.0
    %307 = vmatpush1.msra.mxu0 0.0
    %308 = vmatprep.subr.mxu0 0.0
    %309 = vmatpush1.msra.mxu0 0.0
    %310 = vmatprep.subr.mxu0 0.0
    %311 = vmatpush1.msra.mxu0 0.0
    %312 = vmatprep.subr.mxu0 0.0
    %313 = vmatpush1.msra.mxu0 0.0
    %314 = vmatprep.subr.mxu0 0.0
    %315 = vmatpush1.msra.mxu0 0.0
    %316 = vmatprep.subr.mxu0 0.0
    %317 = vmatpush1.msra.mxu0 0.0
    %318 = vmatprep.subr.mxu0 0.0
    %319 = vmatpush1.msra.mxu0 0.0
    %320 = vmatprep.subr.mxu0 0.0
    %321 = vmatpush1.msra.mxu0 0.0
    %322 = vmatprep.subr.mxu0 0.0
    %323 = vmatpush1.msra.mxu0 0.0
    %324 = vmatprep.subr.mxu0 0.0
    %325 = vmatpush1.msra.mxu0 0.0
    %326 = vmatprep.subr.mxu0 0.0
    %327 = vmatpush1.msra.mxu0 0.0
    %328 = vmatprep.subr.mxu0 0.0
    %329 = vmatpush1.msra.mxu0 0.0
    %330 = vmatprep.mubr.f32.mxu0 0.0
    %331 = vmatmul.mubr.f32.gmra.mrb[0].mxu0 %v260
    %v332 = vpop.f32.mrb[0].mxu0
    %v333 = vadd.f32 %v265, %v332
    %v334 = vpop.f32.mrb[0].mxu0
    %335 = vdwg.mxu0
    %v336 = vmax.f32 %v333, 0.0
    %v337 = vld [vmem:[#allocation7 + $0x3] sm:$0x1]
    %v338 = vlaneseq
    %v339 = vshrl.u32 %v338, 7
    %v340 = vsub.s32 0, %v339
    %v341 = vrot.slane %v337, %v340
    %342 = vmatprep.subr.mxu0 0.0
    %343 = vmatpush1.msra.mxu0 %v89
    %344 = vmatprep.subr.mxu0 0.0
    %345 = vmatpush1.msra.mxu0 %v90
    %346 = vmatprep.subr.mxu0 0.0
    %347 = vmatpush1.msra.mxu0 %v91
    %348 = vmatprep.subr.mxu0 0.0
    %349 = vmatpush1.msra.mxu0 %v92
    %350 = vmatprep.subr.mxu0 0.0
    %351 = vmatpush1.msra.mxu0 %v93
    %352 = vmatprep.subr.mxu0 0.0
    %353 = vmatpush1.msra.mxu0 %v94
    %354 = vmatprep.subr.mxu0 0.0
    %355 = vmatpush1.msra.mxu0 %v95
    %356 = vmatprep.subr.mxu0 0.0
    %357 = vmatpush1.msra.mxu0 %v96
    %358 = vmatprep.subr.mxu0 0.0
    %359 = vmatpush1.msra.mxu0 %v97
    %360 = vmatprep.subr.mxu0 0.0
    %361 = vmatpush1.msra.mxu0 %v98
    %362 = vmatprep.subr.mxu0 0.0
    %363 = vmatpush1.msra.mxu0 %v99
    %364 = vmatprep.subr.mxu0 0.0
    %365 = vmatpush1.msra.mxu0 %v100
    %366 = vmatprep.subr.mxu0 0.0
    %367 = vmatpush1.msra.mxu0 %v101
    %368 = vmatprep.subr.mxu0 0.0
    %369 = vmatpush1.msra.mxu0 %v102
    %370 = vmatprep.subr.mxu0 0.0
    %371 = vmatpush1.msra.mxu0 %v103
    %372 = vmatprep.subr.mxu0 0.0
    %373 = vmatpush1.msra.mxu0 %v104
    %374 = vmatprep.subr.mxu0 0.0
    %375 = vmatpush1.msra.mxu0 0.0
    %376 = vmatprep.subr.mxu0 0.0
    %377 = vmatpush1.msra.mxu0 0.0
    %378 = vmatprep.subr.mxu0 0.0
    %379 = vmatpush1.msra.mxu0 0.0
    %380 = vmatprep.subr.mxu0 0.0
    %381 = vmatpush1.msra.mxu0 0.0
    %382 = vmatprep.subr.mxu0 0.0
    %383 = vmatpush1.msra.mxu0 0.0
    %384 = vmatprep.subr.mxu0 0.0
    %385 = vmatpush1.msra.mxu0 0.0
    %386 = vmatprep.subr.mxu0 0.0
    %387 = vmatpush1.msra.mxu0 0.0
    %388 = vmatprep.subr.mxu0 0.0
    %389 = vmatpush1.msra.mxu0 0.0
    %390 = vmatprep.subr.mxu0 0.0
    %391 = vmatpush1.msra.mxu0 0.0
    %392 = vmatprep.subr.mxu0 0.0
    %393 = vmatpush1.msra.mxu0 0.0
    %394 = vmatprep.subr.mxu0 0.0
    %395 = vmatpush1.msra.mxu0 0.0
    %396 = vmatprep.subr.mxu0 0.0
    %397 = vmatpush1.msra.mxu0 0.0
    %398 = vmatprep.subr.mxu0 0.0
    %399 = vmatpush1.msra.mxu0 0.0
    %400 = vmatprep.subr.mxu0 0.0
    %401 = vmatpush1.msra.mxu0 0.0
    %402 = vmatprep.subr.mxu0 0.0
    %403 = vmatpush1.msra.mxu0 0.0
    %404 = vmatprep.subr.mxu0 0.0
    %405 = vmatpush1.msra.mxu0 0.0
    %406 = vmatprep.mubr.f32.mxu0 0.0
    %407 = vmatmul.mubr.f32.gmra.mrb[0].mxu0 %v336
    %v408 = vpop.f32.mrb[0].mxu0
    %v409 = vadd.f32 %v341, %v408
    %v410 = vpop.f32.mrb[0].mxu0
    %411 = vdwg.mxu0
    %412 = vst.msk [vmem:[#allocation8] sm:$0xff] %vm110, %v409
    %s413 = smul.u32 0, 8
    %v414 = vlaneseq
    %v415 = vshrl.u32 %v414, 7
    %v416 = vstv %s413
    %v417 = vadd.s32 %v416, %v415
    %vm418 = vcmp.lt.s32.totalorder %v417, 2
    %v419 = vsel %vm418, 1, 0
    %v420 = vcvt.s32.f32 %v419
    %v421 = vmul.f32 %v409, %v420
    %423 = vrot.lane.b32.xlu0 %v421, 127
    %v424 = vpop.permute.xlu0 %423
    %vm426 = vcmask 31744
    %v427 = vsel %vm426, %v424, 0.0
    %428 = vadd.xlane.f32.xlu0 %v427
    %v429 = vpop.xlane.xlu0 %428
    %v430 = vrot.slane %v429, 4
    %v431 = vadd.f32 %v429, %v430
    %v432 = vrot.slane %v431, 2
    %v433 = vadd.f32 %v431, %v432
    %v434 = vrot.slane %v433, 1
    %v435 = vadd.f32 %v433, %v434
    %s436 = vtos %v435
    %v437 = vstv %s436
    %438 = vst [vmem:[#allocation9] sm:$0xff] %v437
    // Predicated region
    $region26: #{tpu_custom_call.1} parent=1 // pred_check
      _
    $region27: #{tpu_custom_call.1} parent=1 // pred_check_branch
      %440 = sbr.rel (0) target = $region29
    $region28: #{tpu_custom_call.1} parent=1 // pred_region
      %s442 = ssub.s32 128, 128
      %443 = vsyncadd [#allocation4], %s442
      %s445 = sshll.u32 [#allocation8], 4
      %s446 = int_to_ptr.vmem [resolvable:$true] %s445
      %448 = dma.vmem_to_hbm [thread:$0]  %s446, 128, %s3, [#allocation4]
    $region29: #{tpu_custom_call.1} parent=1 // pred_fallthru
      _
    // Predicated region
    $region30: #{tpu_custom_call.1} parent=1 // pred_check
      _
    $region31: #{tpu_custom_call.1} parent=1 // pred_check_branch
      %450 = sbr.rel (0) target = $region33
    $region32: #{tpu_custom_call.1} parent=1 // pred_region
      %s452 = ssub.s32 128, 128
      %453 = vsyncadd [#allocation10], %s452
      %s455 = sshll.u32 [#allocation9], 4
      %s456 = int_to_ptr.vmem [resolvable:$true] %s455
      %458 = dma.vmem_to_hbm [thread:$0]  %s456, 128, %s4, [#allocation10]
    $region33: #{tpu_custom_call.1} parent=1 // pred_fallthru
      _
    // Predicated region
    $region34: #{tpu_custom_call.1} parent=1 // pred_check
      _
    $region35: #{tpu_custom_call.1} parent=1 // pred_check_branch
      %460 = sbr.rel (0) target = $region37
    $region36: #{tpu_custom_call.1} parent=1 // pred_region
      %461 = dma.done [#allocation4], 128
    $region37: #{tpu_custom_call.1} parent=1 // pred_fallthru
      _
    // Predicated region
    $region38: #{tpu_custom_call.1} parent=1 // pred_check
      _
    $region39: #{tpu_custom_call.1} parent=1 // pred_check_branch
      %463 = sbr.rel (0) target = $region41
    $region40: #{tpu_custom_call.1} parent=1 // pred_region
      %464 = dma.done [#allocation10], 128
    $region41: #{tpu_custom_call.1} parent=1 // pred_fallthru
      _
    %465 = vsyncpa [#allocation3], 1
    %466 = vsyncpa [#allocation6], 1
    %467 = vsyncpa [#allocation4], 1
    %468 = vsyncpa [#allocation10], 1

</llo_original>
